<compile_context>
chip_gen: v7x
topology: tpu7x:2x2x1
jax: 0.10.0
libtpu: 0.0.40
codegen_flags: <defaults>
</compile_context>

<pallas_src>
import jax
import jax.numpy as jnp
from jax.experimental import pallas as pl
from jax.experimental.pallas import tpu as pltpu


def _copy_block_kernel(x_ref, o_ref):
    # Pure data movement: one large, lane-dense, sublane-aligned block per grid step.
    o_ref[...] = x_ref[...]


def channel_wise_combination_by_succession_reference(x: jax.Array) -> jax.Array:
    """Zero-cost equivalent of the module's cat(unbind) path (recommended in production)."""
    B, C, S, V = x.shape
    return x.reshape(B, C * S, V)


def _choose_2d_layout(total_elems: int, rows: int, cols: int):
    """Pick a lane-dense (rows, cols) factorization of the flat, contiguous buffer."""
    if cols % 128 == 0:
        return rows, cols
    for c in (1024, 512, 256, 128):
        if total_elems % c == 0:
            return total_elems // c, c
    # Fall back to the natural (rows, V) layout; full-dim blocks keep it legal
    # (stores become masked vst.msk, still correct).
    return rows, cols


def channel_wise_combination_by_succession(x: jax.Array) -> jax.Array:
    """x: [B, C, S, V] -> [B, C*S, V] via an explicit Pallas copy kernel."""
    B, C, S, V = x.shape
    # NOTE: the reference module's C == 1 branch (unsqueeze) contradicts its own shape
    # assert and is effectively a bug; this kernel requires the C >= 2 cat path.
    assert C >= 2, "number_of_channels == 1 path is a no-op/bug in the reference module"

    itemsize = jnp.dtype(x.dtype).itemsize
    total_rows = B * C * S
    total_elems = total_rows * V

    # Flatten to a contiguous 2D slab (zero-cost reshape), preferring a 128-multiple
    # last dim so stores are unmasked.
    rows2d, cols2d = _choose_2d_layout(total_elems, total_rows, V)
    x2d = x.reshape(rows2d, cols2d)

    # Dtype-aware sublane multiple: 8 (f32) / 16 (bf16) / 32 (int8, fp8).
    sublane = max(8, 32 // itemsize)

    # Row-block sizing: ~4 MiB per buffer (2 operands x 2 pipeline buffers = ~16 MiB),
    # capped at 2048 rows — past the measured 512/1024-row roofline knee, and safe
    # within v7x's 64 MiB physical VMEM.
    target_block_bytes = 4 * 1024 * 1024
    rows_by_vmem = max(sublane, target_block_bytes // max(1, cols2d * itemsize))
    block_rows = min(rows2d, 2048, rows_by_vmem)
    if block_rows < rows2d:
        block_rows = max(sublane, (block_rows // sublane) * sublane)

    grid = (pl.cdiv(rows2d, block_rows),)
    bytes_accessed = 2 * total_elems * itemsize  # HBM read + HBM write

    y2d = pl.pallas_call(
        _copy_block_kernel,
        out_shape=jax.ShapeDtypeStruct((rows2d, cols2d), x.dtype),
        grid_spec=pltpu.PrefetchScalarGridSpec(
            num_scalar_prefetch=0,
            grid=grid,
            in_specs=[pl.BlockSpec((block_rows, cols2d), lambda i: (i, 0))],
            out_specs=pl.BlockSpec((block_rows, cols2d), lambda i: (i, 0)),
        ),
        compiler_params=pltpu.CompilerParams(
            # "parallel" lets v7x shard the row blocks across its 2 TensorCores;
            # measured no-op (and no cost) on single-TC v5e/v6e.
            dimension_semantics=("parallel",),
            # Explicit scoped-VMEM budget: covers 4 buffers x ~4 MiB on all of
            # v5e (16 MiB default), v6e (32 MiB default), v7x (64 MiB physical).
            vmem_limit_bytes=32 * 1024 * 1024,
        ),
        cost_estimate=pl.CostEstimate(
            flops=0, transcendentals=0, bytes_accessed=bytes_accessed
        ),
    )(x2d)

    # Zero-cost reshape back to the module's output shape.
    return y2d.reshape(B, C * S, V)


if __name__ == "__main__":
    key = jax.random.PRNGKey(0)

    # Primary config (matches the module: batch, channels, sequence_length, vector_size).
    B, C, S, V = 2, 4, 8, 128
    x = jax.random.normal(key, (B, C, S, V), dtype=jnp.float32)
    y = jax.block_until_ready(channel_wise_combination_by_succession(x))
    ref = channel_wise_combination_by_succession_reference(x)
    assert y.shape == (B, C * S, V)
    assert jnp.array_equal(y, ref)

    # Secondary config: bf16 with a non-128 vector size exercises the lane-dense
    # re-factorization / full-dim-block fallback path.
    B2, C2, S2, V2 = 2, 3, 5, 48
    x2 = jax.random.normal(jax.random.PRNGKey(0), (B2, C2, S2, V2), dtype=jnp.bfloat16)
    y2 = jax.block_until_ready(channel_wise_combination_by_succession(x2))
    ref2 = channel_wise_combination_by_succession_reference(x2)
    assert y2.shape == (B2, C2 * S2, V2)
    assert jnp.array_equal(y2, ref2)

    print("KERNEL_OK")
</pallas_src>

<mosaic_0001>
module attributes {stable_mosaic.version = 11 : i64} {
  func.func @_copy_block_kernel(%arg0: i32, %arg1: memref<64x128xf32, #tpu.memory_space<vmem>>, %arg2: memref<64x128xf32, #tpu.memory_space<vmem>>) attributes {dimension_semantics = [#tpu.dimension_semantics<parallel>], iteration_bounds = array<i64: 1>, scalar_prefetch = 0 : i64, scratch_operands = 0 : i64, tpu.core_type = #tpu.core_type<tc>, window_params = [{transform_indices = @transform_0, window_bounds = array<i64: 64, 128>}, {transform_indices = @transform_1, window_bounds = array<i64: 64, 128>}]} {
    %c0 = arith.constant 0 : index
    %c0_0 = arith.constant 0 : index
    %0 = vector.load %arg1[%c0, %c0_0] : memref<64x128xf32, #tpu.memory_space<vmem>>, vector<64x128xf32>
    %c0_1 = arith.constant 0 : index
    %c0_2 = arith.constant 0 : index
    %1 = vector.load %arg2[%c0_1, %c0_2] : memref<64x128xf32, #tpu.memory_space<vmem>>, vector<64x128xf32>
    tpu.vector_store %arg2[%c0_1, %c0_2], %0 {strides = array<i32>} : memref<64x128xf32, #tpu.memory_space<vmem>>, vector<64x128xf32>,
    return
  }
  func.func @transform_0(%arg0: i32) -> (i32, i32) {
    %c0_i32 = arith.constant 0 : i32
    %c0_i32_0 = arith.constant 0 : i32
    return %arg0, %c0_i32 : i32, i32
  }
  func.func @transform_1(%arg0: i32) -> (i32, i32) {
    %c0_i32 = arith.constant 0 : i32
    %c0_i32_0 = arith.constant 0 : i32
    return %arg0, %c0_i32 : i32, i32
  }
}

</mosaic_0001>

<llo_original>
// kernel: tpu_custom_call.1
$region0: #{tpu_custom_call.1}
  #allocation0 [shape = 'u32[]', space=smem, size = 0x4, offset = 0x4, fixed_abs, tag = 'smem constant byte address 0x4 - core index']
  #allocation1 [shape = 'u32[144,128]{1,0:T(1,128)}', space=vmem, size = 0x12000, scoped, tag = 'internal scratch']
  %s0 = inlined_call_operand.hbm [shape: f32[64,128], index: 0, kind: input, shape index: {}]
  %s1 = inlined_call_operand.hbm [shape: f32[64,128], index: 1, kind: output, shape index: {}]
  %s2 = sld [smem:[#allocation0]]
  $region18: #{tpu_custom_call.1} parent=0
    _
  %s4 = ssub.s32 1, %s2
  %s5 = scalar_select 0, %s4, %s2
  $region1: #{tpu_custom_call.1} parent=0
    #allocation2 [shape = 'u8[32768]{0}', space=vmem, size = 0x8000, scoped, tag = 'input window, operand 0, single buffered']
    #allocation3 [shape = 's32[1]{0}', space=sflag, size = 0x4, scoped, tag = 'scoped memory for tpu_custom_call.1']
    #allocation4 [shape = 's32[1]{0}', space=sflag, size = 0x4, scoped, tag = 'scoped memory for tpu_custom_call.1']
    #allocation5 [shape = 'u8[32768]{0}', space=vmem, size = 0x8000, scoped, tag = 'output window, operand 0, single buffered']
    %6 = vsyncpa [#allocation3], 0
    %7 = vsyncpa [#allocation4], 0
    // Predicated region
    $region2: #{tpu_custom_call.1} parent=1 // pred_check
      _
    $region3: #{tpu_custom_call.1} parent=1 // pred_check_branch
      %9 = sbr.rel (0) target = $region5
    $region4: #{tpu_custom_call.1} parent=1 // pred_region
      %s11 = ssub.s32 1024, 1024
      %12 = vsyncadd [#allocation3], %s11
      %s13 = sshll.u32 [#allocation2], 4
      %s14 = int_to_ptr.vmem [resolvable:$true] %s13
      %19 = dma.hbm_to_vmem [thread:$0]  %s0, 1024, %s14, [#allocation3], 128, 128, 8
    $region5: #{tpu_custom_call.1} parent=1 // pred_fallthru
      _
    // Predicated region
    $region6: #{tpu_custom_call.1} parent=1 // pred_check
      _
    $region7: #{tpu_custom_call.1} parent=1 // pred_check_branch
      %21 = sbr.rel (0) target = $region9
    $region8: #{tpu_custom_call.1} parent=1 // pred_region
      %22 = dma.done [#allocation3], 1024
    $region9: #{tpu_custom_call.1} parent=1 // pred_fallthru
      _
    %v23 = vld [vmem:[#allocation2] sm:$0xff]
    %v24 = vld [vmem:[#allocation2 + $0x8] sm:$0xff]
    %v25 = vld [vmem:[#allocation2 + $0x10] sm:$0xff]
    %v26 = vld [vmem:[#allocation2 + $0x18] sm:$0xff]
    %v27 = vld [vmem:[#allocation2 + $0x20] sm:$0xff]
    %v28 = vld [vmem:[#allocation2 + $0x28] sm:$0xff]
    %v29 = vld [vmem:[#allocation2 + $0x30] sm:$0xff]
    %v30 = vld [vmem:[#allocation2 + $0x38] sm:$0xff]
    %31 = vst [vmem:[#allocation5] sm:$0xff] %v23
    %32 = vst [vmem:[#allocation5 + $0x8] sm:$0xff] %v24
    %33 = vst [vmem:[#allocation5 + $0x10] sm:$0xff] %v25
    %34 = vst [vmem:[#allocation5 + $0x18] sm:$0xff] %v26
    %35 = vst [vmem:[#allocation5 + $0x20] sm:$0xff] %v27
    %36 = vst [vmem:[#allocation5 + $0x28] sm:$0xff] %v28
    %37 = vst [vmem:[#allocation5 + $0x30] sm:$0xff] %v29
    %38 = vst [vmem:[#allocation5 + $0x38] sm:$0xff] %v30
    // Predicated region
    $region10: #{tpu_custom_call.1} parent=1 // pred_check
      _
    $region11: #{tpu_custom_call.1} parent=1 // pred_check_branch
      %40 = sbr.rel (0) target = $region13
    $region12: #{tpu_custom_call.1} parent=1 // pred_region
      %s42 = ssub.s32 1024, 1024
      %43 = vsyncadd [#allocation4], %s42
      %s44 = sshll.u32 [#allocation5], 4
      %s45 = int_to_ptr.vmem [resolvable:$true] %s44
      %50 = dma.vmem_to_hbm [thread:$0]  %s45, 1024, %s1, [#allocation4], 128, 128, 8
    $region13: #{tpu_custom_call.1} parent=1 // pred_fallthru
      _
    // Predicated region
    $region14: #{tpu_custom_call.1} parent=1 // pred_check
      _
    $region15: #{tpu_custom_call.1} parent=1 // pred_check_branch
      %52 = sbr.rel (0) target = $region17
    $region16: #{tpu_custom_call.1} parent=1 // pred_region
      %53 = dma.done [#allocation4], 1024
    $region17: #{tpu_custom_call.1} parent=1 // pred_fallthru
      _
    %54 = vsyncpa [#allocation3], 1
    %55 = vsyncpa [#allocation4], 1

</llo_original>
